<compile_context>
chip_gen: v5e
topology: v5e:2x2
jax: 0.10.0
libtpu: 0.0.40
codegen_flags: <defaults>
</compile_context>

<pallas_src>
import math

import numpy as np

import jax
import jax.numpy as jnp
from jax.experimental import pallas as pl
from jax.experimental.pallas import tpu as pltpu


# ----------------------------------------------------------------------------
# Trace-time (static) helpers: importance map, window starts, blend map.
# ----------------------------------------------------------------------------
def _importance_map_np(roi_size, mode="gaussian", sigma_scale=0.125):
    """Separable Gaussian centered at roi//2, max-normalized, min-clamped.

    # TODO(synk): MONAI uses an erf-integrated truncated GaussianFilter; this
    # is the sampled-Gaussian approximation of the same importance map.
    """
    if mode != "gaussian":
        return np.ones(roi_size, np.float32)
    maps_1d = []
    for n in roi_size:
        center = n // 2
        sigma = max(n * sigma_scale, 1e-6)
        coords = np.arange(n, dtype=np.float64)
        maps_1d.append(np.exp(-0.5 * ((coords - center) / sigma) ** 2))
    imp = np.outer(maps_1d[0], maps_1d[1])
    imp = imp / imp.max()
    min_nonzero = imp[imp > 0].min()
    imp = np.clip(imp, min_nonzero, None)
    return imp.astype(np.float32)


def _dense_patch_starts(image_size, roi_size, overlap):
    """Same window-start logic as monai.data.utils.dense_patch_slices."""
    per_dim = []
    for dim in range(len(roi_size)):
        img, roi = image_size[dim], roi_size[dim]
        if img <= roi:
            per_dim.append([0])
            continue
        interval = max(int(roi * (1.0 - overlap)), 1)
        scan_num = int(math.ceil((img - roi) / interval)) + 1
        starts = []
        for i in range(scan_num):
            s = i * interval
            if s + roi > img:
                s = img - roi
            starts.append(s)
        per_dim.append(starts)
    return [(y, x) for y in per_dim[0] for x in per_dim[1]]


def _blend_map(image_size, roi_size, starts, imp_np):
    """Data-independent blend factor wsum * (1/wsum) over the full image.

    Mirrors MONAI's (Gaussian-weighted accumulation) / (count map) for a
    per-pixel predictor; computed in f32 at trace time.
    """
    h, w = image_size
    rh, rw = roi_size
    wsum = np.zeros((h, w), np.float32)
    for (ys, xs) in starts:
        wsum[ys:ys + rh, xs:xs + rw] += imp_np
    return (wsum * (np.float32(1.0) / wsum)).astype(np.float32)


def _pick_lane_tile(hw, cap=2048):
    """Largest multiple of 128 that divides hw (capped), else the full extent."""
    if hw % 128 != 0:
        return hw            # full block; exempt from the 128-divisibility rule
    best = 128
    t = 128
    while t <= min(hw, cap):
        if hw % t == 0:
            best = t
        t += 128
    return best


# ----------------------------------------------------------------------------
# Fused Pallas kernel: 1x1-conv predict + bias + Gaussian-weighted window
# accumulation + count normalization, one lane-dense output tile per step.
# ----------------------------------------------------------------------------
def _make_fused_kernel(c_in, c_out, use_mxu):
    def kernel(x_ref, w_ref, b_ref, blend_ref, out_ref):
        # x_ref     : (1, Cin, TILE)  lane-dense flattened pixels
        # w_ref     : (Cout, Cin)     predictor weights
        # b_ref     : (Cout, 1)       predictor bias
        # blend_ref : (1, TILE)       wsum * (1/wsum) per pixel (trace const)
        x = x_ref[0]                                        # (Cin, TILE)
        w = w_ref[...]                                      # (Cout, Cin)
        if use_mxu:
            pred = jnp.dot(w, x, preferred_element_type=jnp.float32)
        else:
            # VPU path for tiny channel counts: Cin broadcast multiply-adds.
            pred = w[:, 0:1] * x[0:1, :]                    # (Cout, TILE)
            for ci in range(1, c_in):
                pred = pred + w[:, ci:ci + 1] * x[ci:ci + 1, :]
        pred = pred + b_ref[...]                            # bias (lane bcast)
        # Gaussian-weighted window accumulation + count normalization, fused.
        out_ref[0] = (pred * blend_ref[...]).astype(out_ref.dtype)
    return kernel


# ----------------------------------------------------------------------------
# SlidingWindowInferer.forward(predictor, x)
# predictor: deterministic 1x1 conv (Cin -> Cout) given by (weight, bias).
# ----------------------------------------------------------------------------
def sliding_window_inference(x, weight, bias, roi_size=(8, 8),
                             sw_batch_size=2, overlap=0.5, mode="gaussian"):
    # sw_batch_size only controls how many windows the predictor sees per call
    # in MONAI; for a deterministic per-pixel predictor the result is identical.
    del sw_batch_size
    b, c_in, h, w_dim = x.shape
    c_out = weight.shape[0]

    imp = _importance_map_np(roi_size, mode)
    starts = _dense_patch_starts((h, w_dim), roi_size, overlap)
    blend = _blend_map((h, w_dim), roi_size, starts, imp)

    hw = h * w_dim
    tile = _pick_lane_tile(hw)
    n_tiles = hw // tile

    x_flat = x.reshape(b, c_in, hw).astype(jnp.float32)
    w_j = weight.astype(jnp.float32)
    b_j = bias.reshape(c_out, 1).astype(jnp.float32)
    blend_j = jnp.asarray(blend.reshape(1, hw))

    use_mxu = (c_in >= 32 or c_out >= 32)
    kernel = _make_fused_kernel(c_in, c_out, use_mxu)

    out_flat = pl.pallas_call(
        kernel,
        out_shape=jax.ShapeDtypeStruct((b, c_out, hw), jnp.float32),
        grid_spec=pltpu.PrefetchScalarGridSpec(
            num_scalar_prefetch=0,
            grid=(b, n_tiles),
            in_specs=[
                pl.BlockSpec((1, c_in, tile), lambda bi, ti: (bi, 0, ti)),
                pl.BlockSpec((c_out, c_in), lambda bi, ti: (0, 0)),
                pl.BlockSpec((c_out, 1), lambda bi, ti: (0, 0)),
                pl.BlockSpec((1, tile), lambda bi, ti: (0, ti)),
            ],
            out_specs=pl.BlockSpec((1, c_out, tile), lambda bi, ti: (bi, 0, ti)),
        ),
        compiler_params=pltpu.CompilerParams(
            # Both grid axes are independent -> shardable across v7x's 2 TCs.
            dimension_semantics=("parallel", "parallel"),
            vmem_limit_bytes=32 * 1024 * 1024),
    )(x_flat, w_j, b_j, blend_j)

    return out_flat.reshape(b, c_out, h, w_dim)


# ----------------------------------------------------------------------------
# Pure-JAX reference (explicit window loop + scatter-add + divide), used only
# to verify the fused Pallas formulation numerically.
# ----------------------------------------------------------------------------
def _reference(x, weight, bias, roi_size, overlap, mode):
    b, c_in, h, w_dim = x.shape
    rh, rw = roi_size
    c_out = weight.shape[0]
    imp = jnp.asarray(_importance_map_np(roi_size, mode))
    starts = _dense_patch_starts((h, w_dim), roi_size, overlap)
    acc = jnp.zeros((b, c_out, h, w_dim), jnp.float32)
    cnt = jnp.zeros((b, c_out, h, w_dim), jnp.float32)
    for bi in range(b):
        for (ys, xs) in starts:
            win = x[bi, :, ys:ys + rh, xs:xs + rw]
            pred = (jnp.einsum("oc,chw->ohw", weight, win)
                    + bias[:, None, None]) * imp[None, :, :]
            acc = acc.at[bi, :, ys:ys + rh, xs:xs + rw].add(pred)
            cnt = cnt.at[bi, :, ys:ys + rh, xs:xs + rw].add(
                jnp.broadcast_to(imp[None], (c_out, rh, rw)))
    return acc / cnt


if __name__ == "__main__":
    key = jax.random.PRNGKey(0)
    kx, kw, kb = jax.random.split(key, 3)

    # Small shapes consistent with the module's forward: NCHW image + ROI.
    B, C_IN, H, W = 2, 4, 16, 16
    C_OUT = 4
    ROI = (8, 8)
    OVERLAP = 0.5

    x = jax.random.normal(kx, (B, C_IN, H, W), dtype=jnp.float32)
    weight = jax.random.normal(kw, (C_OUT, C_IN), dtype=jnp.float32) * 0.1
    bias = jax.random.normal(kb, (C_OUT,), dtype=jnp.float32) * 0.01

    out = sliding_window_inference(x, weight, bias, roi_size=ROI,
                                   sw_batch_size=2, overlap=OVERLAP,
                                   mode="gaussian")
    out = jax.block_until_ready(out)

    ref = _reference(x, weight, bias, ROI, OVERLAP, "gaussian")
    assert out.shape == (B, C_OUT, H, W)
    assert jnp.allclose(out, ref, atol=1e-5, rtol=1e-5), "mismatch vs reference"

    print("KERNEL_OK")
</pallas_src>

<mosaic_0001>
module attributes {stable_mosaic.version = 11 : i64} {
  func.func @kernel(%arg0: i32, %arg1: i32, %arg2: memref<1x4x256xf32, #tpu.memory_space<vmem>>, %arg3: memref<4x4xf32, #tpu.memory_space<vmem>>, %arg4: memref<4x1xf32, #tpu.memory_space<vmem>>, %arg5: memref<1x256xf32, #tpu.memory_space<vmem>>, %arg6: memref<1x4x256xf32, #tpu.memory_space<vmem>>) attributes {dimension_semantics = [#tpu.dimension_semantics<parallel>, #tpu.dimension_semantics<parallel>], iteration_bounds = array<i64: 2, 1>, scalar_prefetch = 0 : i64, scratch_operands = 0 : i64, tpu.core_type = #tpu.core_type<tc>, window_params = [{transform_indices = @transform_0, window_bounds = array<i64: 1, 4, 256>}, {pipeline_mode = #tpu.pipeline_mode<synchronous>, transform_indices = @transform_1, window_bounds = array<i64: 4, 4>}, {pipeline_mode = #tpu.pipeline_mode<synchronous>, transform_indices = @transform_2, window_bounds = array<i64: 4, 1>}, {transform_indices = @transform_3, window_bounds = array<i64: 1, 256>}, {transform_indices = @transform_4, window_bounds = array<i64: 1, 4, 256>}]} {
    %c0 = arith.constant 0 : index
    %c0_0 = arith.constant 0 : index
    %c0_1 = arith.constant 0 : index
    %0 = vector.load %arg2[%c0, %c0_0, %c0_1] : memref<1x4x256xf32, #tpu.memory_space<vmem>>, vector<1x4x256xf32>
    %1 = vector.shape_cast %0 : vector<1x4x256xf32> to vector<4x256xf32>
    %c0_2 = arith.constant 0 : index
    %c0_3 = arith.constant 0 : index
    %2 = vector.load %arg3[%c0_2, %c0_3] : memref<4x4xf32, #tpu.memory_space<vmem>>, vector<4x4xf32>
    %3 = vector.extract_strided_slice %2 {offsets = [0, 0], sizes = [4, 1], strides = [1, 1]} : vector<4x4xf32> to vector<4x1xf32>
    %4 = vector.extract_strided_slice %1 {offsets = [0, 0], sizes = [1, 256], strides = [1, 1]} : vector<4x256xf32> to vector<1x256xf32>
    %5 = vector.broadcast %3 : vector<4x1xf32> to vector<4x256xf32>
    %6 = vector.broadcast %4 : vector<1x256xf32> to vector<4x256xf32>
    %7 = arith.mulf %5, %6 : vector<4x256xf32>
    %8 = vector.extract_strided_slice %2 {offsets = [0, 1], sizes = [4, 1], strides = [1, 1]} : vector<4x4xf32> to vector<4x1xf32>
    %9 = vector.extract_strided_slice %1 {offsets = [1, 0], sizes = [1, 256], strides = [1, 1]} : vector<4x256xf32> to vector<1x256xf32>
    %10 = vector.broadcast %8 : vector<4x1xf32> to vector<4x256xf32>
    %11 = vector.broadcast %9 : vector<1x256xf32> to vector<4x256xf32>
    %12 = arith.mulf %10, %11 : vector<4x256xf32>
    %13 = arith.addf %7, %12 : vector<4x256xf32>
    %14 = vector.extract_strided_slice %2 {offsets = [0, 2], sizes = [4, 1], strides = [1, 1]} : vector<4x4xf32> to vector<4x1xf32>
    %15 = vector.extract_strided_slice %1 {offsets = [2, 0], sizes = [1, 256], strides = [1, 1]} : vector<4x256xf32> to vector<1x256xf32>
    %16 = vector.broadcast %14 : vector<4x1xf32> to vector<4x256xf32>
    %17 = vector.broadcast %15 : vector<1x256xf32> to vector<4x256xf32>
    %18 = arith.mulf %16, %17 : vector<4x256xf32>
    %19 = arith.addf %13, %18 : vector<4x256xf32>
    %20 = vector.extract_strided_slice %2 {offsets = [0, 3], sizes = [4, 1], strides = [1, 1]} : vector<4x4xf32> to vector<4x1xf32>
    %21 = vector.extract_strided_slice %1 {offsets = [3, 0], sizes = [1, 256], strides = [1, 1]} : vector<4x256xf32> to vector<1x256xf32>
    %22 = vector.broadcast %20 : vector<4x1xf32> to vector<4x256xf32>
    %23 = vector.broadcast %21 : vector<1x256xf32> to vector<4x256xf32>
    %24 = arith.mulf %22, %23 : vector<4x256xf32>
    %25 = arith.addf %19, %24 : vector<4x256xf32>
    %c0_4 = arith.constant 0 : index
    %c0_5 = arith.constant 0 : index
    %26 = vector.load %arg4[%c0_4, %c0_5] : memref<4x1xf32, #tpu.memory_space<vmem>>, vector<4x1xf32>
    %27 = vector.broadcast %26 : vector<4x1xf32> to vector<4x256xf32>
    %28 = arith.addf %25, %27 : vector<4x256xf32>
    %c0_6 = arith.constant 0 : index
    %c0_7 = arith.constant 0 : index
    %29 = vector.load %arg5[%c0_6, %c0_7] : memref<1x256xf32, #tpu.memory_space<vmem>>, vector<1x256xf32>
    %30 = vector.broadcast %29 : vector<1x256xf32> to vector<4x256xf32>
    %31 = arith.mulf %28, %30 : vector<4x256xf32>
    %c0_8 = arith.constant 0 : index
    %c0_9 = arith.constant 0 : index
    %c0_10 = arith.constant 0 : index
    %32 = vector.load %arg6[%c0_8, %c0_9, %c0_10] : memref<1x4x256xf32, #tpu.memory_space<vmem>>, vector<1x4x256xf32>
    %33 = vector.shape_cast %32 : vector<1x4x256xf32> to vector<4x256xf32>
    %34 = vector.shape_cast %31 : vector<4x256xf32> to vector<1x4x256xf32>
    tpu.vector_store %arg6[%c0_8, %c0_9, %c0_10], %34 {strides = array<i32>} : memref<1x4x256xf32, #tpu.memory_space<vmem>>, vector<1x4x256xf32>,
    return
  }
  func.func @transform_0(%arg0: i32, %arg1: i32) -> (i32, i32, i32) {
    %c0_i32 = arith.constant 0 : i32
    %c0_i32_0 = arith.constant 0 : i32
    return %arg0, %c0_i32, %arg1 : i32, i32, i32
  }
  func.func @transform_1(%arg0: i32, %arg1: i32) -> (i32, i32) {
    %c0_i32 = arith.constant 0 : i32
    %c0_i32_0 = arith.constant 0 : i32
    %c0_i32_1 = arith.constant 0 : i32
    return %c0_i32, %c0_i32_0 : i32, i32
  }
  func.func @transform_2(%arg0: i32, %arg1: i32) -> (i32, i32) {
    %c0_i32 = arith.constant 0 : i32
    %c0_i32_0 = arith.constant 0 : i32
    %c0_i32_1 = arith.constant 0 : i32
    return %c0_i32, %c0_i32_0 : i32, i32
  }
  func.func @transform_3(%arg0: i32, %arg1: i32) -> (i32, i32) {
    %c0_i32 = arith.constant 0 : i32
    %c0_i32_0 = arith.constant 0 : i32
    return %c0_i32, %arg1 : i32, i32
  }
  func.func @transform_4(%arg0: i32, %arg1: i32) -> (i32, i32, i32) {
    %c0_i32 = arith.constant 0 : i32
    %c0_i32_0 = arith.constant 0 : i32
    return %arg0, %c0_i32, %arg1 : i32, i32, i32
  }
}

</mosaic_0001>

<llo_original>
// kernel: tpu_custom_call.1
$region0: #{tpu_custom_call.1}
  #allocation0 [shape = 'u32[]', space=smem, size = 0x4, offset = 0x4, fixed_abs, tag = 'smem constant byte address 0x4 - core index']
  #allocation1 [shape = 'u32[72,128]{1,0:T(1,128)}', space=vmem, size = 0x9000, scoped, tag = 'internal scratch']
  %s0 = inlined_call_operand.hbm [shape: f32[2,4,256], index: 0, kind: input, shape index: {}]
  %s1 = inlined_call_operand.vmem [shape: f32[4,4], index: 1, kind: input, shape index: {}]
  %s2 = inlined_call_operand.vmem [shape: f32[4,1], index: 2, kind: input, shape index: {}]
  %s3 = inlined_call_operand.hbm [shape: f32[1,256], index: 3, kind: input, shape index: {}]
  %s4 = inlined_call_operand.hbm [shape: f32[2,4,256], index: 4, kind: output, shape index: {}]
  %s5 = sld [smem:[#allocation0]]
  $region57: #{tpu_custom_call.1} parent=0
    _
  %s7 = ssub.s32 1, %s5
  %s8 = scalar_select 0, %s7, %s5
  $region1: #{tpu_custom_call.1} parent=0
    #allocation2 [shape = 'u8[8192]{0}', space=vmem, size = 0x2000, scoped, tag = 'input window, operand 0']
    #allocation3 [shape = 's32[2]{0}', space=sflag, size = 0x8, scoped, tag = 'scoped memory for tpu_custom_call.1']
    #allocation4 [shape = 's32[2]{0}', space=sflag, size = 0x8, scoped, tag = 'scoped memory for tpu_custom_call.1']
    #allocation5 [shape = 'u8[1024]{0}', space=vmem, size = 0x400, scoped, tag = 'input window, operand 3, single buffered']
    #allocation6 [shape = 's32[1]{0}', space=sflag, size = 0x4, scoped, tag = 'scoped memory for tpu_custom_call.1']
    #allocation7 [shape = 'u8[8192]{0}', space=vmem, size = 0x2000, scoped, tag = 'output window, operand 0']
    %9 = vsyncpa [#allocation3], 0
    %s10 = scalar_lea.sflag [#allocation3], 1
    %11 = vsyncpa %s10, 0
    %12 = vsyncpa [#allocation6], 0
    %13 = vsyncpa [#allocation4], 0
    %s14 = scalar_lea.sflag [#allocation4], 1
    %15 = vsyncpa %s14, 0
    loop: start=0, step=1, limit=4
    $region2: #{tpu_custom_call.1} parent=1 // loop_pre_header
      _
    $region3: #{tpu_custom_call.1} parent=1 // loop_header
      %s17 = sphi 0, %s21
      %p18 = scmp.ge.s32.totalorder %s17, 4
      %s24 = sphi 0, %s36
      %s25 = sphi 0, %s32
      %s26 = sphi 0, %s24
      %s27 = sphi 0, %s25
      %s28 = sphi 0, %s26
      %s29 = sphi 0, %s27
      %s41 = sphi 0, %s43
      %s44 = sphi 0, %s41
      %s45 = sphi 0, %s44
      %s61 = sphi 0, %s45
      %s65 = sphi 0, %s65
      %s67 = sphi 0, %s65
      %s68 = sphi 0, %s67
      %s82 = sphi 0, %s68
      %s86 = sphi 0, %s86
      %s88 = sphi 0, %s86
      %s89 = sphi 0, %s88
      %s103 = sphi 0, %s89
      %s109 = sphi 0, %s111
      %s112 = sphi 0, %s109
      %s113 = sphi 0, %s112
      %s129 = sphi 0, %s113
      %s137 = sphi 0, %s139
      %s140 = sphi 0, %s137
      %s141 = sphi 0, %s140
      %s157 = sphi 0, %s141
    $region4: #{tpu_custom_call.1} parent=1 // loop_header_branch
      %20 = sbr.rel (%p18) target = $region8
    $region5: #{tpu_custom_call.1} parent=1 // loop_body
      %s22 = ssub.s32 %s17, 1
      %s23 = ssub.s32 %s17, 2
      %s30 = sadd.s32 1, %s25
      %p31 = scmp.ge.s32.totalorder %s30, 1
      %s32 = scalar_select %p31, 0, %s30
      %s33 = sadd.s32 1, %s24
      %s34 = scalar_select %p31, %s33, %s24
      %p35 = scmp.ge.s32.totalorder %s34, 2
      %s36 = scalar_select %p35, 0, %s34
      %s37 = ssub.s32 %s24, %s36
      %s38 = ssub.s32 %s25, %s32
      %s39 = sor.u32 %s37, %s38
      %p40 = scmp.eq.s32.totalorder %s39, 0
      %s42 = sadd.s32 %s41, 1
      %s43 = scalar_select %p40, %s41, %s42
      %p46 = pneg %p40
      %p47 = scmp.eq.s32.totalorder %s17, 1
      %p48 = por %p46, %p47
      %p49 = scmp.ne.s32.totalorder %s41, %s44
      %p50 = scmp.eq.s32.totalorder %s17, 0
      %p51 = por %p49, %p50
      %p52 = scmp.ne.s32.totalorder %s41, %s44
      %p53 = scmp.eq.s32.totalorder %s22, 1
      %p54 = por %p52, %p53
      %p55 = scmp.ne.s32.totalorder %s44, %s45
      %p56 = scmp.eq.s32.totalorder %s22, 0
      %p57 = por %p55, %p56
      %p58 = scmp.ne.s32.totalorder %s44, %s45
      %p59 = scmp.eq.s32.totalorder %s23, 1
      %p60 = por %p58, %p59
      %p62 = scmp.ne.s32.totalorder %s45, %s61
      %p63 = scmp.eq.s32.totalorder %s23, 0
      %p64 = por %p62, %p63
      %s66 = sadd.s32 %s65, 1
      %p69 = scmp.eq.s32.totalorder %s17, 1
      %p70 = scmp.ne.s32.totalorder %s65, %s67
      %p71 = scmp.eq.s32.totalorder %s17, 0
      %p72 = por %p70, %p71
      %p73 = scmp.ne.s32.totalorder %s65, %s67
      %p74 = scmp.eq.s32.totalorder %s22, 1
      %p75 = por %p73, %p74
      %p76 = scmp.ne.s32.totalorder %s67, %s68
      %p77 = scmp.eq.s32.totalorder %s22, 0
      %p78 = por %p76, %p77
      %p79 = scmp.ne.s32.totalorder %s67, %s68
      %p80 = scmp.eq.s32.totalorder %s23, 1
      %p81 = por %p79, %p80
      %p83 = scmp.ne.s32.totalorder %s68, %s82
      %p84 = scmp.eq.s32.totalorder %s23, 0
      %p85 = por %p83, %p84
      %s87 = sadd.s32 %s86, 1
      %p90 = scmp.eq.s32.totalorder %s17, 1
      %p91 = scmp.ne.s32.totalorder %s86, %s88
      %p92 = scmp.eq.s32.totalorder %s17, 0
      %p93 = por %p91, %p92
      %p94 = scmp.ne.s32.totalorder %s86, %s88
      %p95 = scmp.eq.s32.totalorder %s22, 1
      %p96 = por %p94, %p95
      %p97 = scmp.ne.s32.totalorder %s88, %s89
      %p98 = scmp.eq.s32.totalorder %s22, 0
      %p99 = por %p97, %p98
      %p100 = scmp.ne.s32.totalorder %s88, %s89
      %p101 = scmp.eq.s32.totalorder %s23, 1
      %p102 = por %p100, %p101
      %p104 = scmp.ne.s32.totalorder %s89, %s103
      %p105 = scmp.eq.s32.totalorder %s23, 0
      %p106 = por %p104, %p105
      %s107 = ssub.s32 %s25, %s32
      %p108 = scmp.eq.s32.totalorder %s107, 0
      %s110 = sadd.s32 %s109, 1
      %s111 = scalar_select %p108, %s109, %s110
      %p114 = pneg %p108
      %p115 = scmp.eq.s32.totalorder %s17, 1
      %p116 = por %p114, %p115
      %p117 = scmp.ne.s32.totalorder %s109, %s112
      %p118 = scmp.eq.s32.totalorder %s17, 0
      %p119 = por %p117, %p118
      %p120 = scmp.ne.s32.totalorder %s109, %s112
      %p121 = scmp.eq.s32.totalorder %s22, 1
      %p122 = por %p120, %p121
      %p123 = scmp.ne.s32.totalorder %s112, %s113
      %p124 = scmp.eq.s32.totalorder %s22, 0
      %p125 = por %p123, %p124
      %p126 = scmp.ne.s32.totalorder %s112, %s113
      %p127 = scmp.eq.s32.totalorder %s23, 1
      %p128 = por %p126, %p127
      %p130 = scmp.ne.s32.totalorder %s113, %s129
      %p131 = scmp.eq.s32.totalorder %s23, 0
      %p132 = por %p130, %p131
      %s133 = ssub.s32 %s24, %s36
      %s134 = ssub.s32 %s25, %s32
      %s135 = sor.u32 %s133, %s134
      %p136 = scmp.eq.s32.totalorder %s135, 0
      %s138 = sadd.s32 %s137, 1
      %s139 = scalar_select %p136, %s137, %s138
      %p142 = pneg %p136
      %p143 = scmp.eq.s32.totalorder %s17, 1
      %p144 = por %p142, %p143
      %p145 = scmp.ne.s32.totalorder %s137, %s140
      %p146 = scmp.eq.s32.totalorder %s17, 0
      %p147 = por %p145, %p146
      %p148 = scmp.ne.s32.totalorder %s137, %s140
      %p149 = scmp.eq.s32.totalorder %s22, 1
      %p150 = por %p148, %p149
      %p151 = scmp.ne.s32.totalorder %s140, %s141
      %p152 = scmp.eq.s32.totalorder %s22, 0
      %p153 = por %p151, %p152
      %p154 = scmp.ne.s32.totalorder %s140, %s141
      %p155 = scmp.eq.s32.totalorder %s23, 1
      %p156 = por %p154, %p155
      %p158 = scmp.ne.s32.totalorder %s141, %s157
      %p159 = scmp.eq.s32.totalorder %s23, 0
      %p160 = por %p158, %p159
      %p161 = scmp.le.s32.totalorder 1, %s17
      %p162 = scmp.lt.s32.totalorder %s17, 3
      %p163 = pnand %p161, %p162
      %p164 = pneg %p163
      // Predicated region
      $region9: #{tpu_custom_call.1} parent=5 // pred_check
        _
      $region10: #{tpu_custom_call.1} parent=5 // pred_check_branch
        %166 = sbr.rel (%p163) target = $region12
      $region11: #{tpu_custom_call.1} parent=5 // pred_region
        %s167 = ssub.s32 %s17, 1
        // Predicated region
        $region13: #{tpu_custom_call.1} parent=11 // pred_check
          %p168 = pneg %p78
        $region14: #{tpu_custom_call.1} parent=11 // pred_check_branch
          %170 = sbr.rel (%p168) target = $region16
        $region15: #{tpu_custom_call.1} parent=11 // pred_region
          _
        $region16: #{tpu_custom_call.1} parent=11 // pred_fallthru
          _
        // Predicated region
        $region17: #{tpu_custom_call.1} parent=11 // pred_check
          %p171 = pneg %p99
        $region18: #{tpu_custom_call.1} parent=11 // pred_check_branch
          %173 = sbr.rel (%p171) target = $region20
        $region19: #{tpu_custom_call.1} parent=11 // pred_region
          _
        $region20: #{tpu_custom_call.1} parent=11 // pred_fallthru
          _
        // Predicated region
        $region21: #{tpu_custom_call.1} parent=11 // pred_check
          %p174 = pneg %p125
        $region22: #{tpu_custom_call.1} parent=11 // pred_check_branch
          %176 = sbr.rel (%p174) target = $region24
        $region23: #{tpu_custom_call.1} parent=11 // pred_region
          %s177 = smul.u32 2, %s27
          %179 = vsyncadd [#allocation6], 0
          %s180 = scalar_lea.hbm %s3, %s177
          %s182 = sshll.u32 %s180, 4
          %s183 = int_to_ptr.hbm [resolvable:$true] %s182
          %s184 = sshll.u32 [#allocation5], 4
          %s185 = int_to_ptr.vmem [resolvable:$true] %s184
          %187 = dma.hbm_to_vmem [thread:$0]  %s183, 32, %s185, [#allocation6]
        $region24: #{tpu_custom_call.1} parent=11 // pred_fallthru
          _
      $region12: #{tpu_custom_call.1} parent=5 // pred_fallthru
        _
      %p188 = scmp.lt.s32.totalorder %s17, 2
      // Predicated region
      $region25: #{tpu_custom_call.1} parent=5 // pred_check
        %p189 = pneg %p188
      $region26: #{tpu_custom_call.1} parent=5 // pred_check_branch
        %191 = sbr.rel (%p189) target = $region28
      $region27: #{tpu_custom_call.1} parent=5 // pred_region
        // Predicated region
        $region29: #{tpu_custom_call.1} parent=27 // pred_check
          %p192 = pneg %p51
        $region30: #{tpu_custom_call.1} parent=27 // pred_check_branch
          %194 = sbr.rel (%p192) target = $region32
        $region31: #{tpu_custom_call.1} parent=27 // pred_region
          %s195 = sand.u32 %s41, 1
          %s196 = scalar_lea.sflag [#allocation3], %s195
          %s197 = sand.u32 %s41, 1
          %s198 = smul.addr %s197, 8
          %s199 = scalar_lea.vmem [#allocation2], %s198
          %s200 = smul.u32 2, %s25
          %202 = vsyncadd %s196, 0
          %s203 = smul.addr %s24, 2
          %s204 = sadd.s32 %s200, %s203
          %s205 = smul.addr %s204, 4
          %s206 = scalar_lea.hbm %s0, %s205
          %s208 = sshll.u32 %s206, 4
          %s209 = int_to_ptr.hbm [resolvable:$true] %s208
          %s210 = sshll.u32 %s199, 4
          %s211 = int_to_ptr.vmem [resolvable:$true] %s210
          %213 = dma.hbm_to_vmem [thread:$0]  %s209, 128, %s211, %s196
        $region32: #{tpu_custom_call.1} parent=27 // pred_fallthru
          _
      $region28: #{tpu_custom_call.1} parent=5 // pred_fallthru
        _
      %p214 = scmp.le.s32.totalorder 1, %s17
      %p215 = scmp.lt.s32.totalorder %s17, 3
      %p216 = pnand %p214, %p215
      %p217 = pneg %p216
      // Predicated region
      $region33: #{tpu_custom_call.1} parent=5 // pred_check
        _
      $region34: #{tpu_custom_call.1} parent=5 // pred_check_branch
        %219 = sbr.rel (%p216) target = $region36
      $region35: #{tpu_custom_call.1} parent=5 // pred_region
        %s220 = ssub.s32 %s17, 1
        %s221 = sand.u32 %s44, 1
        %s222 = scalar_lea.sflag [#allocation3], %s221
        %s223 = sand.u32 %s44, 1
        %s224 = smul.addr %s223, 8
        %s225 = scalar_lea.vmem [#allocation2], %s224
        // Predicated region
        $region37: #{tpu_custom_call.1} parent=35 // pred_check
          %p226 = pneg %p57
        $region38: #{tpu_custom_call.1} parent=35 // pred_check_branch
          %228 = sbr.rel (%p226) target = $region40
        $region39: #{tpu_custom_call.1} parent=35 // pred_region
          %230 = dma.done %s222, 128
        $region40: #{tpu_custom_call.1} parent=35 // pred_fallthru
          _
        // Predicated region
        $region41: #{tpu_custom_call.1} parent=35 // pred_check
          %p231 = pneg %p125
        $region42: #{tpu_custom_call.1} parent=35 // pred_check_branch
          %233 = sbr.rel (%p231) target = $region44
        $region43: #{tpu_custom_call.1} parent=35 // pred_region
          %235 = dma.done [#allocation6], 32
        $region44: #{tpu_custom_call.1} parent=35 // pred_fallthru
          _
        %s236 = sand.u32 %s44, 1
        %s237 = scalar_lea.sflag [#allocation3], %s236
        %s238 = sand.u32 %s44, 1
        %s239 = smul.addr %s238, 8
        %s240 = scalar_lea.vmem [#allocation2], %s239
        %p241 = pneg %p57
        %p242 = pneg %p54
        %p243 = pneg %p78
        %p244 = pneg %p75
        %p245 = pneg %p99
        %p246 = pneg %p96
        %p247 = pneg %p125
        %p248 = pneg %p122
        %p249 = pneg %p153
        %p250 = pneg %p150
        %s251 = sand.u32 %s140, 1
        %s252 = scalar_lea.sflag [#allocation4], %s251
        %s253 = sand.u32 %s140, 1
        %s254 = smul.addr %s253, 8
        %s255 = scalar_lea.vmem [#allocation7], %s254
        %s256 = smul.u32 2, %s27
        %s257 = smul.u32 2, %s27
        %s258 = smul.u32 2, %s27
        %v259 = vld [vmem:[%s225] sm:$0xff]
        %v260 = vld [vmem:[%s1] sm:$0xf]
        %262 = vset.pattern.permute.xlu0 0
        %263 = vperm.xlu0 %262, %v260
        %v264 = vpop.permute.xlu0 %263
        %v267 = vperm.slane %v259, 0
        %v268 = vperm.slane %v259, 4
        %v271 = vperm.slane %v267, 0
        %v272 = vperm.slane %v268, 0
        %v273 = vmul.f32 %v264, %v271
        %v274 = vmul.f32 %v264, %v272
        %275 = vset.pattern.permute.xlu0 1
        %276 = vperm.xlu0 %275, %v260
        %v277 = vpop.permute.xlu0 %276
        %v279 = vperm.slane %v259, 1
        %v280 = vperm.slane %v259, 5
        %v283 = vperm.slane %v279, 1
        %v284 = vperm.slane %v280, 1
        %v285 = vmul.f32 %v277, %v283
        %v286 = vmul.f32 %v277, %v284
        %v287 = vadd.f32 %v273, %v285
        %v288 = vadd.f32 %v274, %v286
        %289 = vset.pattern.permute.xlu0 2
        %290 = vperm.xlu0 %289, %v260
        %v291 = vpop.permute.xlu0 %290
        %v293 = vperm.slane %v259, 2
        %v294 = vperm.slane %v259, 6
        %v297 = vperm.slane %v293, 2
        %v298 = vperm.slane %v294, 2
        %v299 = vmul.f32 %v291, %v297
        %v300 = vmul.f32 %v291, %v298
        %v301 = vadd.f32 %v287, %v299
        %v302 = vadd.f32 %v288, %v300
        %303 = vset.pattern.permute.xlu0 3
        %304 = vperm.xlu0 %303, %v260
        %v305 = vpop.permute.xlu0 %304
        %v307 = vperm.slane %v259, 3
        %v308 = vperm.slane %v259, 7
        %v311 = vperm.slane %v307, 3
        %v312 = vperm.slane %v308, 3
        %v313 = vmul.f32 %v305, %v311
        %v314 = vmul.f32 %v305, %v312
        %v315 = vadd.f32 %v301, %v313
        %v316 = vadd.f32 %v302, %v314
        %v317 = vld [vmem:[%s2] sm:$0xf]
        %319 = vset.pattern.permute.xlu0 0
        %320 = vperm.xlu0 %319, %v317
        %v321 = vpop.permute.xlu0 %320
        %v323 = vadd.f32 %v315, %v321
        %v324 = vadd.f32 %v316, %v321
        %v325 = vld [vmem:[#allocation5] sm:$0x3]
        %v327 = vperm.slane %v325, 0
        %v328 = vperm.slane %v325, 1
        %v331 = vmul.f32 %v323, %v327
        %v332 = vmul.f32 %v324, %v328
        %v335 = vrot.slane %v332, 4
        %vm336 = vcmask 1043456
        %v337 = vsel %vm336, %v331, %v335
        %339 = vst [vmem:[%s255] sm:$0xff] %v337
        %s340 = sand.u32 %s140, 1
        %s341 = scalar_lea.sflag [#allocation4], %s340
        %s342 = sand.u32 %s140, 1
        %s343 = smul.addr %s342, 8
        %s344 = scalar_lea.vmem [#allocation7], %s343
        // Predicated region
        $region45: #{tpu_custom_call.1} parent=35 // pred_check
          %p345 = pneg %p150
        $region46: #{tpu_custom_call.1} parent=35 // pred_check_branch
          %347 = sbr.rel (%p345) target = $region48
        $region47: #{tpu_custom_call.1} parent=35 // pred_region
          %s348 = smul.u32 2, %s27
          %350 = vsyncadd %s341, 0
          %s351 = smul.addr %s26, 2
          %s352 = sadd.s32 %s348, %s351
          %s353 = smul.addr %s352, 4
          %s354 = scalar_lea.hbm %s4, %s353
          %s356 = sshll.u32 %s344, 4
          %s357 = int_to_ptr.vmem [resolvable:$true] %s356
          %s358 = sshll.u32 %s354, 4
          %s359 = int_to_ptr.hbm [resolvable:$true] %s358
          %361 = dma.vmem_to_hbm [thread:$0]  %s357, 128, %s359, %s341
        $region48: #{tpu_custom_call.1} parent=35 // pred_fallthru
          _
      $region36: #{tpu_custom_call.1} parent=5 // pred_fallthru
        _
      %p362 = scmp.le.s32.totalorder 2, %s17
      // Predicated region
      $region49: #{tpu_custom_call.1} parent=5 // pred_check
        %p363 = pneg %p362
      $region50: #{tpu_custom_call.1} parent=5 // pred_check_branch
        %365 = sbr.rel (%p363) target = $region52
      $region51: #{tpu_custom_call.1} parent=5 // pred_region
        %s366 = ssub.s32 %s17, 2
        // Predicated region
        $region53: #{tpu_custom_call.1} parent=51 // pred_check
          %p367 = pneg %p156
        $region54: #{tpu_custom_call.1} parent=51 // pred_check_branch
          %369 = sbr.rel (%p367) target = $region56
        $region55: #{tpu_custom_call.1} parent=51 // pred_region
          %s370 = sand.u32 %s141, 1
          %s371 = scalar_lea.sflag [#allocation4], %s370
          %s372 = sand.u32 %s141, 1
          %s373 = smul.addr %s372, 8
          %s374 = scalar_lea.vmem [#allocation7], %s373
          %376 = dma.done %s371, 128
        $region56: #{tpu_custom_call.1} parent=51 // pred_fallthru
          _
      $region52: #{tpu_custom_call.1} parent=5 // pred_fallthru
        _
    $region6: #{tpu_custom_call.1} parent=1 // loop_footer
      %s21 = sadd.s32 1, %s17
    $region7: #{tpu_custom_call.1} parent=1 // loop_footer_branch
      %16 = sbr.rel target = $region3
    $region8: #{tpu_custom_call.1} parent=1 // loop_exit
      _
    %377 = vsyncpa [#allocation3], 1
    %s378 = scalar_lea.sflag [#allocation3], 1
    %379 = vsyncpa %s378, 1
    %380 = vsyncpa [#allocation6], 1
    %381 = vsyncpa [#allocation4], 1
    %s382 = scalar_lea.sflag [#allocation4], 1
    %383 = vsyncpa %s382, 1

</llo_original>
